<compile_context>
chip_gen: v7x
topology: tpu7x:2x2x1
jax: 0.10.0
libtpu: 0.0.40
codegen_flags: <defaults>
</compile_context>

<pallas_src>
import functools

import jax
import jax.numpy as jnp
from jax.experimental import pallas as pl
from jax.experimental.pallas import tpu as pltpu


def _round_up(x, m):
    return ((x + m - 1) // m) * m


def _pad2(a, rows, cols):
    """Zero-pad a 2-D array up to (rows, cols) (no-op if already that shape)."""
    pr, pc = rows - a.shape[0], cols - a.shape[1]
    if pr == 0 and pc == 0:
        return a
    return jnp.pad(a, ((0, pr), (0, pc)))


def _encoders(x1_ref, x2_ref, w1_ref, b1_ref, w2_ref, b2_ref):
    """Linear + bias + ReLU per modality; bf16 MXU inputs, f32 accumulation."""
    h1 = jnp.dot(x1_ref[...].astype(jnp.bfloat16), w1_ref[...],
                 preferred_element_type=jnp.float32)
    h1 = jnp.maximum(h1 + b1_ref[...], 0.0)
    h2 = jnp.dot(x2_ref[...].astype(jnp.bfloat16), w2_ref[...],
                 preferred_element_type=jnp.float32)
    h2 = jnp.maximum(h2 + b2_ref[...], 0.0)
    return h1, h2


def mmdl_kernel_fused(x1_ref, x2_ref, w1_ref, b1_ref, w2_ref, b2_ref,
                      whc_ref, bh_ref, out_ref, hcat_ref):
    """v6e/v7x path: single K=2*HP head matmul via a lane-aligned scratch."""
    hp = w1_ref.shape[1]
    h1, h2 = _encoders(x1_ref, x2_ref, w1_ref, b1_ref, w2_ref, b2_ref)
    # 128-aligned static slices -> plain vst, no cross-lane shuffles.
    hcat_ref[:, :hp] = h1.astype(jnp.bfloat16)
    hcat_ref[:, hp:] = h2.astype(jnp.bfloat16)
    acc = jnp.dot(hcat_ref[...], whc_ref[...],
                  preferred_element_type=jnp.float32)
    out_ref[...] = (acc + bh_ref[...]).astype(out_ref.dtype)


def mmdl_kernel_split(x1_ref, x2_ref, w1_ref, b1_ref, w2_ref, b2_ref,
                      whc_ref, bh_ref, out_ref):
    """v5e path: two K=HP head dots accumulated in f32 (no scratch stores)."""
    hp = w1_ref.shape[1]
    h1, h2 = _encoders(x1_ref, x2_ref, w1_ref, b1_ref, w2_ref, b2_ref)
    acc = jnp.dot(h1.astype(jnp.bfloat16), whc_ref[:hp, :],
                  preferred_element_type=jnp.float32)
    acc = acc + jnp.dot(h2.astype(jnp.bfloat16), whc_ref[hp:, :],
                        preferred_element_type=jnp.float32)
    out_ref[...] = (acc + bh_ref[...]).astype(out_ref.dtype)


def _use_fused_head():
    """Fuse the head into one K=256 dot on v6e/v7x; keep split dots on <=v5."""
    try:
        kind = jax.devices()[0].device_kind.lower()
    except Exception:  # pragma: no cover - be conservative
        return True
    return not any(tag in kind for tag in ("v2", "v3", "v4", "v5"))


@jax.jit
def mmdl_forward(x1, x2, params):
    """Full MMDL forward (2 encoders -> late fusion -> 2 heads) in one fused,
    batch-tiled Pallas kernel. Returns (out1, out2) in float32."""
    w1, b1, w2, b2, wh1, bh1, wh2, bh2 = params

    B, D1 = x1.shape
    _, D2 = x2.shape
    H = w1.shape[1]
    C1 = wh1.shape[1]
    C2 = wh2.shape[1]

    LANE = 128
    DP1 = _round_up(D1, LANE)
    DP2 = _round_up(D2, LANE)
    HP = _round_up(H, LANE)
    CP1 = _round_up(C1, LANE)           # head-1 gets its own lane slab
    CP2 = _round_up(C2, LANE)           # head-2 gets its own lane slab
    CP = CP1 + CP2

    # Batch tiling: tiles up to 512 rows; BP rounded to a multiple of TM so
    # every grid step is a full (unmasked) block. 16 = bf16 sublane tile.
    BP0 = _round_up(max(B, 1), 16)
    TM = min(BP0, 512)
    BP = _round_up(BP0, TM)
    grid = (pl.cdiv(BP, TM),)

    # --- Host-side packing (zero-padded, so math is exact). -----------------
    # Inputs stay f32 (cast to bf16 in-kernel); weights are pre-cast to bf16.
    x1p = _pad2(x1.astype(jnp.float32), BP, DP1)
    x2p = _pad2(x2.astype(jnp.float32), BP, DP2)
    w1p = _pad2(w1, DP1, HP).astype(jnp.bfloat16)
    w2p = _pad2(w2, DP2, HP).astype(jnp.bfloat16)
    b1p = _pad2(b1.reshape(1, -1), 1, HP).astype(jnp.float32)
    b2p = _pad2(b2.reshape(1, -1), 1, HP).astype(jnp.float32)

    # Stacked head weight (2*HP, CP): rows [0:HP) act on h1, rows [HP:2HP) on
    # h2; head-1 lives in lanes [0:CP1), head-2 in lanes [CP1:CP).
    whc = jnp.zeros((2 * HP, CP), jnp.float32)
    whc = whc.at[:H, :C1].set(wh1[:H, :])
    whc = whc.at[HP:HP + H, :C1].set(wh1[H:, :])
    whc = whc.at[:H, CP1:CP1 + C2].set(wh2[:H, :])
    whc = whc.at[HP:HP + H, CP1:CP1 + C2].set(wh2[H:, :])
    whc = whc.astype(jnp.bfloat16)

    bhc = jnp.zeros((1, CP), jnp.float32)
    bhc = bhc.at[0, :C1].set(bh1.reshape(-1))
    bhc = bhc.at[0, CP1:CP1 + C2].set(bh2.reshape(-1))

    # --- Specs: batch-tiled activations, VMEM-resident weights/biases. ------
    batch_spec = lambda cols: pl.BlockSpec((TM, cols), lambda i: (i, 0))
    const_spec = lambda rows, cols: pl.BlockSpec((rows, cols), lambda i: (0, 0))

    fused = _use_fused_head()
    kernel = mmdl_kernel_fused if fused else mmdl_kernel_split
    scratch = [pltpu.VMEM((TM, 2 * HP), jnp.bfloat16)] if fused else []

    cost = pl.CostEstimate(
        flops=2 * BP * (DP1 + DP2) * HP + 2 * BP * (2 * HP) * CP,
        transcendentals=0,
        bytes_accessed=(BP * DP1 * 4 + BP * DP2 * 4          # inputs (f32)
                        + (DP1 + DP2) * HP * 2                # encoder weights
                        + 2 * HP * CP * 2                     # head weights
                        + (2 * HP + CP) * 4                   # biases
                        + BP * CP * 4),                       # output (f32)
    )

    out_full = pl.pallas_call(
        kernel,
        out_shape=jax.ShapeDtypeStruct((BP, CP), jnp.float32),
        grid=grid,
        in_specs=[
            batch_spec(DP1),          # x1 (f32)
            batch_spec(DP2),          # x2 (f32)
            const_spec(DP1, HP),      # w1 (bf16)
            const_spec(1, HP),        # b1 (f32)
            const_spec(DP2, HP),      # w2 (bf16)
            const_spec(1, HP),        # b2 (f32)
            const_spec(2 * HP, CP),   # stacked head weight (bf16)
            const_spec(1, CP),        # stacked head bias (f32)
        ],
        out_specs=batch_spec(CP),
        scratch_shapes=scratch,
        compiler_params=pltpu.CompilerParams(
            dimension_semantics=("parallel",),
            vmem_limit_bytes=32 << 20,
        ),
        cost_estimate=cost,
    )(x1p, x2p, w1p, b1p, w2p, b2p, whc, bhc)

    out1 = out_full[:B, :C1]                 # lane-aligned slab 1
    out2 = out_full[:B, CP1:CP1 + C2]        # lane-aligned slab 2
    return out1, out2


def mmdl_reference(x1, x2, params):
    """Pure-JAX f32 reference of the original module's forward pass."""
    w1, b1, w2, b2, wh1, bh1, wh2, bh2 = params
    h1 = jnp.maximum(x1 @ w1 + b1.reshape(1, -1), 0.0)
    h2 = jnp.maximum(x2 @ w2 + b2.reshape(1, -1), 0.0)
    fused = jnp.concatenate([h1, h2], axis=-1)
    return fused @ wh1 + bh1.reshape(1, -1), fused @ wh2 + bh2.reshape(1, -1)


if __name__ == "__main__":
    # Small, module-consistent shapes: 2 modalities, batch 8.
    B, D1, D2, H, C1, C2 = 8, 16, 32, 32, 8, 16

    key = jax.random.PRNGKey(0)
    keys = jax.random.split(key, 10)

    # Deterministic synthetic parameters (no checkpoint loading).
    w1 = jax.random.normal(keys[0], (D1, H), jnp.float32) * 0.1
    b1 = jax.random.normal(keys[1], (H,), jnp.float32) * 0.1
    w2 = jax.random.normal(keys[2], (D2, H), jnp.float32) * 0.1
    b2 = jax.random.normal(keys[3], (H,), jnp.float32) * 0.1
    wh1 = jax.random.normal(keys[4], (2 * H, C1), jnp.float32) * 0.1
    bh1 = jax.random.normal(keys[5], (C1,), jnp.float32) * 0.1
    wh2 = jax.random.normal(keys[6], (2 * H, C2), jnp.float32) * 0.1
    bh2 = jax.random.normal(keys[7], (C2,), jnp.float32) * 0.1
    params = (w1, b1, w2, b2, wh1, bh1, wh2, bh2)

    # Inputs: one tensor per modality.
    x1 = jax.random.normal(keys[8], (B, D1), jnp.float32)
    x2 = jax.random.normal(keys[9], (B, D2), jnp.float32)

    out1, out2 = mmdl_forward(x1, x2, params)
    jax.block_until_ready((out1, out2))

    ref1, ref2 = mmdl_reference(x1, x2, params)
    # bf16 MXU inputs + f32 accumulation -> compare against f32 reference with
    # a bf16-appropriate tolerance.
    assert out1.shape == ref1.shape and out2.shape == ref2.shape
    assert jnp.allclose(out1, ref1, atol=3e-2, rtol=2e-2)
    assert jnp.allclose(out2, ref2, atol=3e-2, rtol=2e-2)

    print("KERNEL_OK")
</pallas_src>

<mosaic_0001>
module attributes {stable_mosaic.version = 11 : i64} {
  func.func @mmdl_kernel_fused(%arg0: i32, %arg1: memref<16x128xf32, #tpu.memory_space<vmem>>, %arg2: memref<16x128xf32, #tpu.memory_space<vmem>>, %arg3: memref<128x128xbf16, #tpu.memory_space<vmem>>, %arg4: memref<1x128xf32, #tpu.memory_space<vmem>>, %arg5: memref<128x128xbf16, #tpu.memory_space<vmem>>, %arg6: memref<1x128xf32, #tpu.memory_space<vmem>>, %arg7: memref<256x256xbf16, #tpu.memory_space<vmem>>, %arg8: memref<1x256xf32, #tpu.memory_space<vmem>>, %arg9: memref<16x256xf32, #tpu.memory_space<vmem>>, %arg10: memref<16x256xbf16, #tpu.memory_space<vmem>>) attributes {dimension_semantics = [#tpu.dimension_semantics<parallel>], iteration_bounds = array<i64: 1>, scalar_prefetch = 0 : i64, scratch_operands = 1 : i64, tpu.core_type = #tpu.core_type<tc>, window_params = [{transform_indices = @transform_0, window_bounds = array<i64: 16, 128>}, {transform_indices = @transform_1, window_bounds = array<i64: 16, 128>}, {pipeline_mode = #tpu.pipeline_mode<synchronous>, transform_indices = @transform_2, window_bounds = array<i64: 128, 128>}, {pipeline_mode = #tpu.pipeline_mode<synchronous>, transform_indices = @transform_3, window_bounds = array<i64: 1, 128>}, {pipeline_mode = #tpu.pipeline_mode<synchronous>, transform_indices = @transform_4, window_bounds = array<i64: 128, 128>}, {pipeline_mode = #tpu.pipeline_mode<synchronous>, transform_indices = @transform_5, window_bounds = array<i64: 1, 128>}, {pipeline_mode = #tpu.pipeline_mode<synchronous>, transform_indices = @transform_6, window_bounds = array<i64: 256, 256>}, {pipeline_mode = #tpu.pipeline_mode<synchronous>, transform_indices = @transform_7, window_bounds = array<i64: 1, 256>}, {transform_indices = @transform_8, window_bounds = array<i64: 16, 256>}]} {
    %c0 = arith.constant 0 : index
    %c0_0 = arith.constant 0 : index
    %0 = vector.load %arg1[%c0, %c0_0] : memref<16x128xf32, #tpu.memory_space<vmem>>, vector<16x128xf32>
    %1 = arith.truncf %0 : vector<16x128xf32> to vector<16x128xbf16>
    %c0_1 = arith.constant 0 : index
    %c0_2 = arith.constant 0 : index
    %2 = vector.load %arg3[%c0_1, %c0_2] : memref<128x128xbf16, #tpu.memory_space<vmem>>, vector<128x128xbf16>
    %cst = arith.constant dense<0.000000e+00> : vector<16x128xf32>
    %3 = tpu.matmul %1, %2, %cst {dimension_numbers = #tpu.dot_dimension_numbers<[1], [0], [0], [1], [0, 0, 1, 1], [], []>} : vector<16x128xbf16>, vector<128x128xbf16>, vector<16x128xf32> -> vector<16x128xf32>
    %c0_3 = arith.constant 0 : index
    %c0_4 = arith.constant 0 : index
    %4 = vector.load %arg4[%c0_3, %c0_4] : memref<1x128xf32, #tpu.memory_space<vmem>>, vector<1x128xf32>
    %5 = vector.broadcast %4 : vector<1x128xf32> to vector<16x128xf32>
    %6 = arith.addf %3, %5 : vector<16x128xf32>
    %cst_5 = arith.constant 0.000000e+00 : f32
    %7 = vector.broadcast %cst_5 : f32 to vector<16x128xf32>
    %8 = arith.maximumf %6, %7 : vector<16x128xf32>
    %c0_6 = arith.constant 0 : index
    %c0_7 = arith.constant 0 : index
    %9 = vector.load %arg2[%c0_6, %c0_7] : memref<16x128xf32, #tpu.memory_space<vmem>>, vector<16x128xf32>
    %10 = arith.truncf %9 : vector<16x128xf32> to vector<16x128xbf16>
    %c0_8 = arith.constant 0 : index
    %c0_9 = arith.constant 0 : index
    %11 = vector.load %arg5[%c0_8, %c0_9] : memref<128x128xbf16, #tpu.memory_space<vmem>>, vector<128x128xbf16>
    %cst_10 = arith.constant dense<0.000000e+00> : vector<16x128xf32>
    %12 = tpu.matmul %10, %11, %cst_10 {dimension_numbers = #tpu.dot_dimension_numbers<[1], [0], [0], [1], [0, 0, 1, 1], [], []>} : vector<16x128xbf16>, vector<128x128xbf16>, vector<16x128xf32> -> vector<16x128xf32>
    %c0_11 = arith.constant 0 : index
    %c0_12 = arith.constant 0 : index
    %13 = vector.load %arg6[%c0_11, %c0_12] : memref<1x128xf32, #tpu.memory_space<vmem>>, vector<1x128xf32>
    %14 = vector.broadcast %13 : vector<1x128xf32> to vector<16x128xf32>
    %15 = arith.addf %12, %14 : vector<16x128xf32>
    %cst_13 = arith.constant 0.000000e+00 : f32
    %16 = vector.broadcast %cst_13 : f32 to vector<16x128xf32>
    %17 = arith.maximumf %15, %16 : vector<16x128xf32>
    %18 = arith.truncf %8 : vector<16x128xf32> to vector<16x128xbf16>
    %c0_14 = arith.constant 0 : index
    %c0_15 = arith.constant 0 : index
    %19 = vector.load %arg10[%c0_14, %c0_15] : memref<16x256xbf16, #tpu.memory_space<vmem>>, vector<16x128xbf16>
    tpu.vector_store %arg10[%c0_14, %c0_15], %18 {strides = array<i32>} : memref<16x256xbf16, #tpu.memory_space<vmem>>, vector<16x128xbf16>,
    %20 = arith.truncf %17 : vector<16x128xf32> to vector<16x128xbf16>
    %c0_16 = arith.constant 0 : index
    %c128 = arith.constant 128 : index
    %21 = vector.load %arg10[%c0_16, %c128] : memref<16x256xbf16, #tpu.memory_space<vmem>>, vector<16x128xbf16>
    tpu.vector_store %arg10[%c0_16, %c128], %20 {strides = array<i32>} : memref<16x256xbf16, #tpu.memory_space<vmem>>, vector<16x128xbf16>,
    %c0_17 = arith.constant 0 : index
    %c0_18 = arith.constant 0 : index
    %22 = vector.load %arg10[%c0_17, %c0_18] : memref<16x256xbf16, #tpu.memory_space<vmem>>, vector<16x256xbf16>
    %c0_19 = arith.constant 0 : index
    %c0_20 = arith.constant 0 : index
    %23 = vector.load %arg7[%c0_19, %c0_20] : memref<256x256xbf16, #tpu.memory_space<vmem>>, vector<256x256xbf16>
    %cst_21 = arith.constant dense<0.000000e+00> : vector<16x256xf32>
    %24 = tpu.matmul %22, %23, %cst_21 {dimension_numbers = #tpu.dot_dimension_numbers<[1], [0], [0], [1], [0, 0, 1, 1], [], []>} : vector<16x256xbf16>, vector<256x256xbf16>, vector<16x256xf32> -> vector<16x256xf32>
    %c0_22 = arith.constant 0 : index
    %c0_23 = arith.constant 0 : index
    %25 = vector.load %arg8[%c0_22, %c0_23] : memref<1x256xf32, #tpu.memory_space<vmem>>, vector<1x256xf32>
    %26 = vector.broadcast %25 : vector<1x256xf32> to vector<16x256xf32>
    %27 = arith.addf %24, %26 : vector<16x256xf32>
    %c0_24 = arith.constant 0 : index
    %c0_25 = arith.constant 0 : index
    %28 = vector.load %arg9[%c0_24, %c0_25] : memref<16x256xf32, #tpu.memory_space<vmem>>, vector<16x256xf32>
    tpu.vector_store %arg9[%c0_24, %c0_25], %27 {strides = array<i32>} : memref<16x256xf32, #tpu.memory_space<vmem>>, vector<16x256xf32>,
    return
  }
  func.func @transform_0(%arg0: i32) -> (i32, i32) {
    %c0_i32 = arith.constant 0 : i32
    %c0_i32_0 = arith.constant 0 : i32
    return %arg0, %c0_i32 : i32, i32
  }
  func.func @transform_1(%arg0: i32) -> (i32, i32) {
    %c0_i32 = arith.constant 0 : i32
    %c0_i32_0 = arith.constant 0 : i32
    return %arg0, %c0_i32 : i32, i32
  }
  func.func @transform_2(%arg0: i32) -> (i32, i32) {
    %c0_i32 = arith.constant 0 : i32
    %c0_i32_0 = arith.constant 0 : i32
    %c0_i32_1 = arith.constant 0 : i32
    return %c0_i32, %c0_i32_0 : i32, i32
  }
  func.func @transform_3(%arg0: i32) -> (i32, i32) {
    %c0_i32 = arith.constant 0 : i32
    %c0_i32_0 = arith.constant 0 : i32
    %c0_i32_1 = arith.constant 0 : i32
    return %c0_i32, %c0_i32_0 : i32, i32
  }
  func.func @transform_4(%arg0: i32) -> (i32, i32) {
    %c0_i32 = arith.constant 0 : i32
    %c0_i32_0 = arith.constant 0 : i32
    %c0_i32_1 = arith.constant 0 : i32
    return %c0_i32, %c0_i32_0 : i32, i32
  }
  func.func @transform_5(%arg0: i32) -> (i32, i32) {
    %c0_i32 = arith.constant 0 : i32
    %c0_i32_0 = arith.constant 0 : i32
    %c0_i32_1 = arith.constant 0 : i32
    return %c0_i32, %c0_i32_0 : i32, i32
  }
  func.func @transform_6(%arg0: i32) -> (i32, i32) {
    %c0_i32 = arith.constant 0 : i32
    %c0_i32_0 = arith.constant 0 : i32
    %c0_i32_1 = arith.constant 0 : i32
    return %c0_i32, %c0_i32_0 : i32, i32
  }
  func.func @transform_7(%arg0: i32) -> (i32, i32) {
    %c0_i32 = arith.constant 0 : i32
    %c0_i32_0 = arith.constant 0 : i32
    %c0_i32_1 = arith.constant 0 : i32
    return %c0_i32, %c0_i32_0 : i32, i32
  }
  func.func @transform_8(%arg0: i32) -> (i32, i32) {
    %c0_i32 = arith.constant 0 : i32
    %c0_i32_0 = arith.constant 0 : i32
    return %arg0, %c0_i32 : i32, i32
  }
}

</mosaic_0001>

<llo_original>
// kernel: mmdl_forward.1
$region0: #{mmdl_forward.1}
  #allocation0 [shape = 'u32[]', space=smem, size = 0x4, offset = 0x4, fixed_abs, tag = 'smem constant byte address 0x4 - core index']
  #allocation1 [shape = 'u32[144,128]{1,0:T(1,128)}', space=vmem, size = 0x12000, scoped, tag = 'internal scratch']
  #allocation2 [shape = 'bf16[16,256]{1,0:T(16,128)(2,1)}', space=vmem, size = 0x2000, scoped, tag = 'scratch operand']
  %s0 = inlined_call_operand.vmem [shape: f32[16,128], index: 0, kind: input, shape index: {}]
  %s1 = inlined_call_operand.vmem [shape: f32[16,128], index: 1, kind: input, shape index: {}]
  %s2 = inlined_call_operand.vmem [shape: bf16[128,128], index: 2, kind: input, shape index: {}]
  %s3 = inlined_call_operand.vmem [shape: f32[1,128], index: 3, kind: input, shape index: {}]
  %s4 = inlined_call_operand.vmem [shape: bf16[128,128], index: 4, kind: input, shape index: {}]
  %s5 = inlined_call_operand.vmem [shape: f32[1,128], index: 5, kind: input, shape index: {}]
  %s6 = inlined_call_operand.vmem [shape: bf16[256,256], index: 6, kind: input, shape index: {}]
  %s7 = inlined_call_operand.vmem [shape: f32[1,256], index: 7, kind: input, shape index: {}]
  %s8 = inlined_call_operand.vmem [shape: f32[16,256], index: 8, kind: output, shape index: {}]
  %s9 = sld [smem:[#allocation0]]
  $region42: #{mmdl_forward.1} parent=0
    _
  %s11 = ssub.s32 1, %s9
  %s12 = scalar_select 0, %s11, %s9
  // Predicated region
  $region2: #{mmdl_forward.1} parent=0 // pred_check
    _
  $region3: #{mmdl_forward.1} parent=0 // pred_check_branch
    %14 = sbr.rel (0) target = $region5
  $region4: #{mmdl_forward.1} parent=0 // pred_region
    _
  $region5: #{mmdl_forward.1} parent=0 // pred_fallthru
    _
  // Predicated region
  $region6: #{mmdl_forward.1} parent=0 // pred_check
    _
  $region7: #{mmdl_forward.1} parent=0 // pred_check_branch
    %16 = sbr.rel (0) target = $region9
  $region8: #{mmdl_forward.1} parent=0 // pred_region
    _
  $region9: #{mmdl_forward.1} parent=0 // pred_fallthru
    _
  // Predicated region
  $region10: #{mmdl_forward.1} parent=0 // pred_check
    _
  $region11: #{mmdl_forward.1} parent=0 // pred_check_branch
    %18 = sbr.rel (0) target = $region13
  $region12: #{mmdl_forward.1} parent=0 // pred_region
    _
  $region13: #{mmdl_forward.1} parent=0 // pred_fallthru
    _
  // Predicated region
  $region14: #{mmdl_forward.1} parent=0 // pred_check
    _
  $region15: #{mmdl_forward.1} parent=0 // pred_check_branch
    %20 = sbr.rel (0) target = $region17
  $region16: #{mmdl_forward.1} parent=0 // pred_region
    _
  $region17: #{mmdl_forward.1} parent=0 // pred_fallthru
    _
  // Predicated region
  $region18: #{mmdl_forward.1} parent=0 // pred_check
    _
  $region19: #{mmdl_forward.1} parent=0 // pred_check_branch
    %22 = sbr.rel (0) target = $region21
  $region20: #{mmdl_forward.1} parent=0 // pred_region
    _
  $region21: #{mmdl_forward.1} parent=0 // pred_fallthru
    _
  // Predicated region
  $region22: #{mmdl_forward.1} parent=0 // pred_check
    _
  $region23: #{mmdl_forward.1} parent=0 // pred_check_branch
    %24 = sbr.rel (0) target = $region25
  $region24: #{mmdl_forward.1} parent=0 // pred_region
    _
  $region25: #{mmdl_forward.1} parent=0 // pred_fallthru
    _
  // Predicated region
  $region26: #{mmdl_forward.1} parent=0 // pred_check
    _
  $region27: #{mmdl_forward.1} parent=0 // pred_check_branch
    %26 = sbr.rel (0) target = $region29
  $region28: #{mmdl_forward.1} parent=0 // pred_region
    _
  $region29: #{mmdl_forward.1} parent=0 // pred_fallthru
    _
  // Predicated region
  $region30: #{mmdl_forward.1} parent=0 // pred_check
    _
  $region31: #{mmdl_forward.1} parent=0 // pred_check_branch
    %28 = sbr.rel (0) target = $region33
  $region32: #{mmdl_forward.1} parent=0 // pred_region
    _
  $region33: #{mmdl_forward.1} parent=0 // pred_fallthru
    _
  %v30 = vld [vmem:[%s0] sm:$0xff]
  %v31 = vld [vmem:[%s0 + $0x8] sm:$0xff]
  %v32 = vpack.c.bf16 %v31, %v30
  %v33 = vld [vmem:[%s2] sm:$0xf]
  %v34 = vld [vmem:[%s2 + $0x4] sm:$0xf]
  %v35 = vld [vmem:[%s2 + $0x8] sm:$0xf]
  %v36 = vld [vmem:[%s2 + $0xc] sm:$0xf]
  %v37 = vld [vmem:[%s2 + $0x10] sm:$0xf]
  %v38 = vld [vmem:[%s2 + $0x14] sm:$0xf]
  %v39 = vld [vmem:[%s2 + $0x18] sm:$0xf]
  %v40 = vld [vmem:[%s2 + $0x1c] sm:$0xf]
  %v41 = vld [vmem:[%s2 + $0x20] sm:$0xf]
  %v42 = vld [vmem:[%s2 + $0x24] sm:$0xf]
  %v43 = vld [vmem:[%s2 + $0x28] sm:$0xf]
  %v44 = vld [vmem:[%s2 + $0x2c] sm:$0xf]
  %v45 = vld [vmem:[%s2 + $0x30] sm:$0xf]
  %v46 = vld [vmem:[%s2 + $0x34] sm:$0xf]
  %v47 = vld [vmem:[%s2 + $0x38] sm:$0xf]
  %v48 = vld [vmem:[%s2 + $0x3c] sm:$0xf]
  %v49 = vld [vmem:[%s3] sm:$0x1]
  %v51 = vlaneseq
  %v52 = vshrl.u32 %v51, 7
  %v53 = vsub.s32 0, %v52
  %v54 = vrot.slane %v49, %v53
  %v72 = vunpack.c.l.b16 %v33
  %v73 = vunpack.c.l.b16 %v34
  %v74 = vunpack.c.l.b16 %v35
  %v75 = vunpack.c.l.b16 %v36
  %v76 = vunpack.c.l.b16 %v37
  %v77 = vunpack.c.l.b16 %v38
  %v78 = vunpack.c.l.b16 %v39
  %v79 = vunpack.c.l.b16 %v40
  %v80 = vunpack.c.l.b16 %v41
  %v81 = vunpack.c.l.b16 %v42
  %v82 = vunpack.c.l.b16 %v43
  %v83 = vunpack.c.l.b16 %v44
  %v84 = vunpack.c.l.b16 %v45
  %v85 = vunpack.c.l.b16 %v46
  %v86 = vunpack.c.l.b16 %v47
  %v87 = vunpack.c.l.b16 %v48
  %v88 = vpack.c.b16 %v73, %v72
  %v89 = vpack.c.b16 %v75, %v74
  %v90 = vpack.c.b16 %v77, %v76
  %v91 = vpack.c.b16 %v79, %v78
  %v92 = vpack.c.b16 %v81, %v80
  %v93 = vpack.c.b16 %v83, %v82
  %v94 = vpack.c.b16 %v85, %v84
  %v95 = vpack.c.b16 %v87, %v86
  %104 = vmatprep.subr.bf16.mxu0 0
  %105 = vmatpush1.bf16.msra.mxu0 %v88
  %106 = vmatprep.subr.bf16.mxu0 0
  %107 = vmatpush1.bf16.msra.mxu0 %v89
  %108 = vmatprep.subr.bf16.mxu0 0
  %109 = vmatpush1.bf16.msra.mxu0 %v90
  %110 = vmatprep.subr.bf16.mxu0 0
  %111 = vmatpush1.bf16.msra.mxu0 %v91
  %112 = vmatprep.subr.bf16.mxu0 0
  %113 = vmatpush1.bf16.msra.mxu0 %v92
  %114 = vmatprep.subr.bf16.mxu0 0
  %115 = vmatpush1.bf16.msra.mxu0 %v93
  %116 = vmatprep.subr.bf16.mxu0 0
  %117 = vmatpush1.bf16.msra.mxu0 %v94
  %118 = vmatprep.subr.bf16.mxu0 0
  %119 = vmatpush1.bf16.msra.mxu0 %v95
  %120 = vmatprep.subr.bf16.mxu0 0
  %121 = vmatpush1.bf16.msra.mxu0 0
  %122 = vmatprep.subr.bf16.mxu0 0
  %123 = vmatpush1.bf16.msra.mxu0 0
  %124 = vmatprep.subr.bf16.mxu0 0
  %125 = vmatpush1.bf16.msra.mxu0 0
  %126 = vmatprep.subr.bf16.mxu0 0
  %127 = vmatpush1.bf16.msra.mxu0 0
  %128 = vmatprep.subr.bf16.mxu0 0
  %129 = vmatpush1.bf16.msra.mxu0 0
  %130 = vmatprep.subr.bf16.mxu0 0
  %131 = vmatpush1.bf16.msra.mxu0 0
  %132 = vmatprep.subr.bf16.mxu0 0
  %133 = vmatpush1.bf16.msra.mxu0 0
  %134 = vmatprep.subr.bf16.mxu0 0
  %135 = vmatpush1.bf16.msra.mxu0 0
  %136 = vmatprep.mubr.bf16.mxu0 0
  %137 = vmatmul.mubr.bf16.gmra.mrb[0].mxu0 %v32
  %v138 = vpop.f32.mrb[0].mxu0
  %v139 = vadd.f32 %v54, %v138
  %v140 = vpop.f32.mrb[0].mxu0
  %v141 = vpop.f32.mrb[0].mxu0
  %v142 = vadd.f32 %v54, %v141
  %v143 = vpop.f32.mrb[0].mxu0
  %144 = vdwg.mxu0
  %v145 = vmax.f32 %v139, 0.0
  %v146 = vmax.f32 %v142, 0.0
  %v147 = vld [vmem:[%s1] sm:$0xff]
  %v148 = vld [vmem:[%s1 + $0x8] sm:$0xff]
  %v149 = vpack.c.bf16 %v148, %v147
  %v150 = vld [vmem:[%s4] sm:$0xf]
  %v151 = vld [vmem:[%s4 + $0x4] sm:$0xf]
  %v152 = vld [vmem:[%s4 + $0x8] sm:$0xf]
  %v153 = vld [vmem:[%s4 + $0xc] sm:$0xf]
  %v154 = vld [vmem:[%s4 + $0x10] sm:$0xf]
  %v155 = vld [vmem:[%s4 + $0x14] sm:$0xf]
  %v156 = vld [vmem:[%s4 + $0x18] sm:$0xf]
  %v157 = vld [vmem:[%s4 + $0x1c] sm:$0xf]
  %v158 = vld [vmem:[%s4 + $0x20] sm:$0xf]
  %v159 = vld [vmem:[%s4 + $0x24] sm:$0xf]
  %v160 = vld [vmem:[%s4 + $0x28] sm:$0xf]
  %v161 = vld [vmem:[%s4 + $0x2c] sm:$0xf]
  %v162 = vld [vmem:[%s4 + $0x30] sm:$0xf]
  %v163 = vld [vmem:[%s4 + $0x34] sm:$0xf]
  %v164 = vld [vmem:[%s4 + $0x38] sm:$0xf]
  %v165 = vld [vmem:[%s4 + $0x3c] sm:$0xf]
  %v166 = vld [vmem:[%s5] sm:$0x1]
  %v168 = vlaneseq
  %v169 = vshrl.u32 %v168, 7
  %v170 = vsub.s32 0, %v169
  %v171 = vrot.slane %v166, %v170
  %v189 = vunpack.c.l.b16 %v150
  %v190 = vunpack.c.l.b16 %v151
  %v191 = vunpack.c.l.b16 %v152
  %v192 = vunpack.c.l.b16 %v153
  %v193 = vunpack.c.l.b16 %v154
  %v194 = vunpack.c.l.b16 %v155
  %v195 = vunpack.c.l.b16 %v156
  %v196 = vunpack.c.l.b16 %v157
  %v197 = vunpack.c.l.b16 %v158
  %v198 = vunpack.c.l.b16 %v159
  %v199 = vunpack.c.l.b16 %v160
  %v200 = vunpack.c.l.b16 %v161
  %v201 = vunpack.c.l.b16 %v162
  %v202 = vunpack.c.l.b16 %v163
  %v203 = vunpack.c.l.b16 %v164
  %v204 = vunpack.c.l.b16 %v165
  %v205 = vpack.c.b16 %v190, %v189
  %v206 = vpack.c.b16 %v192, %v191
  %v207 = vpack.c.b16 %v194, %v193
  %v208 = vpack.c.b16 %v196, %v195
  %v209 = vpack.c.b16 %v198, %v197
  %v210 = vpack.c.b16 %v200, %v199
  %v211 = vpack.c.b16 %v202, %v201
  %v212 = vpack.c.b16 %v204, %v203
  %221 = vmatprep.subr.bf16.mxu0 0
  %222 = vmatpush1.bf16.msra.mxu0 %v205
  %223 = vmatprep.subr.bf16.mxu0 0
  %224 = vmatpush1.bf16.msra.mxu0 %v206
  %225 = vmatprep.subr.bf16.mxu0 0
  %226 = vmatpush1.bf16.msra.mxu0 %v207
  %227 = vmatprep.subr.bf16.mxu0 0
  %228 = vmatpush1.bf16.msra.mxu0 %v208
  %229 = vmatprep.subr.bf16.mxu0 0
  %230 = vmatpush1.bf16.msra.mxu0 %v209
  %231 = vmatprep.subr.bf16.mxu0 0
  %232 = vmatpush1.bf16.msra.mxu0 %v210
  %233 = vmatprep.subr.bf16.mxu0 0
  %234 = vmatpush1.bf16.msra.mxu0 %v211
  %235 = vmatprep.subr.bf16.mxu0 0
  %236 = vmatpush1.bf16.msra.mxu0 %v212
  %237 = vmatprep.subr.bf16.mxu0 0
  %238 = vmatpush1.bf16.msra.mxu0 0
  %239 = vmatprep.subr.bf16.mxu0 0
  %240 = vmatpush1.bf16.msra.mxu0 0
  %241 = vmatprep.subr.bf16.mxu0 0
  %242 = vmatpush1.bf16.msra.mxu0 0
  %243 = vmatprep.subr.bf16.mxu0 0
  %244 = vmatpush1.bf16.msra.mxu0 0
  %245 = vmatprep.subr.bf16.mxu0 0
  %246 = vmatpush1.bf16.msra.mxu0 0
  %247 = vmatprep.subr.bf16.mxu0 0
  %248 = vmatpush1.bf16.msra.mxu0 0
  %249 = vmatprep.subr.bf16.mxu0 0
  %250 = vmatpush1.bf16.msra.mxu0 0
  %251 = vmatprep.subr.bf16.mxu0 0
  %252 = vmatpush1.bf16.msra.mxu0 0
  %253 = vmatprep.mubr.bf16.mxu0 0
  %254 = vmatmul.mubr.bf16.gmra.mrb[0].mxu0 %v149
  %v255 = vpop.f32.mrb[0].mxu0
  %v256 = vadd.f32 %v171, %v255
  %v257 = vpop.f32.mrb[0].mxu0
  %v258 = vpop.f32.mrb[0].mxu0
  %v259 = vadd.f32 %v171, %v258
  %v260 = vpop.f32.mrb[0].mxu0
  %261 = vdwg.mxu0
  %v262 = vmax.f32 %v256, 0.0
  %v263 = vmax.f32 %v259, 0.0
  %v264 = vpack.c.bf16 %v146, %v145
  %265 = vst [vmem:[#allocation2] sm:$0xff] %v264
  %v266 = vpack.c.bf16 %v263, %v262
  %267 = vst [vmem:[#allocation2 + $0x8] sm:$0xff] %v266
  %v268 = vld [vmem:[#allocation2] sm:$0xff]
  %v269 = vld [vmem:[#allocation2 + $0x8] sm:$0xff]
  %v270 = vld [vmem:[%s6] sm:$0xff]
  %v271 = vld [vmem:[%s6 + $0x8] sm:$0xff]
  %v272 = vld [vmem:[%s6 + $0x10] sm:$0xff]
  %v273 = vld [vmem:[%s6 + $0x18] sm:$0xff]
  %v274 = vld [vmem:[%s6 + $0x20] sm:$0xff]
  %v275 = vld [vmem:[%s6 + $0x28] sm:$0xff]
  %v276 = vld [vmem:[%s6 + $0x30] sm:$0xff]
  %v277 = vld [vmem:[%s6 + $0x38] sm:$0xff]
  %v278 = vld [vmem:[%s6 + $0x40] sm:$0xff]
  %v279 = vld [vmem:[%s6 + $0x48] sm:$0xff]
  %v280 = vld [vmem:[%s6 + $0x50] sm:$0xff]
  %v281 = vld [vmem:[%s6 + $0x58] sm:$0xff]
  %v282 = vld [vmem:[%s6 + $0x60] sm:$0xff]
  %v283 = vld [vmem:[%s6 + $0x68] sm:$0xff]
  %v284 = vld [vmem:[%s6 + $0x70] sm:$0xff]
  %v285 = vld [vmem:[%s6 + $0x78] sm:$0xff]
  %v286 = vld [vmem:[%s6 + $0x80] sm:$0xff]
  %v287 = vld [vmem:[%s6 + $0x88] sm:$0xff]
  %v288 = vld [vmem:[%s6 + $0x90] sm:$0xff]
  %v289 = vld [vmem:[%s6 + $0x98] sm:$0xff]
  %v290 = vld [vmem:[%s6 + $0xa0] sm:$0xff]
  %v291 = vld [vmem:[%s6 + $0xa8] sm:$0xff]
  %v292 = vld [vmem:[%s6 + $0xb0] sm:$0xff]
  %v293 = vld [vmem:[%s6 + $0xb8] sm:$0xff]
  %v294 = vld [vmem:[%s6 + $0xc0] sm:$0xff]
  %v295 = vld [vmem:[%s6 + $0xc8] sm:$0xff]
  %v296 = vld [vmem:[%s6 + $0xd0] sm:$0xff]
  %v297 = vld [vmem:[%s6 + $0xd8] sm:$0xff]
  %v298 = vld [vmem:[%s6 + $0xe0] sm:$0xff]
  %v299 = vld [vmem:[%s6 + $0xe8] sm:$0xff]
  %v300 = vld [vmem:[%s6 + $0xf0] sm:$0xff]
  %v301 = vld [vmem:[%s6 + $0xf8] sm:$0xff]
  %v302 = vld [vmem:[%s7] sm:$0x3]
  %v304 = vlaneseq
  %v305 = vshrl.u32 %v304, 7
  %v306 = vsub.s32 0, %v305
  %v307 = vrot.slane %v302, %v306
  %v308 = vlaneseq
  %v309 = vshrl.u32 %v308, 7
  %v310 = vsub.s32 1, %v309
  %v311 = vrot.slane %v302, %v310
  %v346 = vunpack.c.l.b16 %v270
  %v347 = vunpack.c.h.b16 %v270
  %v348 = vunpack.c.l.b16 %v271
  %v349 = vunpack.c.h.b16 %v271
  %v350 = vunpack.c.l.b16 %v272
  %v351 = vunpack.c.h.b16 %v272
  %v352 = vunpack.c.l.b16 %v273
  %v353 = vunpack.c.h.b16 %v273
  %v354 = vunpack.c.l.b16 %v274
  %v355 = vunpack.c.h.b16 %v274
  %v356 = vunpack.c.l.b16 %v275
  %v357 = vunpack.c.h.b16 %v275
  %v358 = vunpack.c.l.b16 %v276
  %v359 = vunpack.c.h.b16 %v276
  %v360 = vunpack.c.l.b16 %v277
  %v361 = vunpack.c.h.b16 %v277
  %v362 = vunpack.c.l.b16 %v278
  %v363 = vunpack.c.h.b16 %v278
  %v364 = vunpack.c.l.b16 %v279
  %v365 = vunpack.c.h.b16 %v279
  %v366 = vunpack.c.l.b16 %v280
  %v367 = vunpack.c.h.b16 %v280
  %v368 = vunpack.c.l.b16 %v281
  %v369 = vunpack.c.h.b16 %v281
  %v370 = vunpack.c.l.b16 %v282
  %v371 = vunpack.c.h.b16 %v282
  %v372 = vunpack.c.l.b16 %v283
  %v373 = vunpack.c.h.b16 %v283
  %v374 = vunpack.c.l.b16 %v284
  %v375 = vunpack.c.h.b16 %v284
  %v376 = vunpack.c.l.b16 %v285
  %v377 = vunpack.c.h.b16 %v285
  %v378 = vunpack.c.l.b16 %v286
  %v379 = vunpack.c.h.b16 %v286
  %v380 = vunpack.c.l.b16 %v287
  %v381 = vunpack.c.h.b16 %v287
  %v382 = vunpack.c.l.b16 %v288
  %v383 = vunpack.c.h.b16 %v288
  %v384 = vunpack.c.l.b16 %v289
  %v385 = vunpack.c.h.b16 %v289
  %v386 = vunpack.c.l.b16 %v290
  %v387 = vunpack.c.h.b16 %v290
  %v388 = vunpack.c.l.b16 %v291
  %v389 = vunpack.c.h.b16 %v291
  %v390 = vunpack.c.l.b16 %v292
  %v391 = vunpack.c.h.b16 %v292
  %v392 = vunpack.c.l.b16 %v293
  %v393 = vunpack.c.h.b16 %v293
  %v394 = vunpack.c.l.b16 %v294
  %v395 = vunpack.c.h.b16 %v294
  %v396 = vunpack.c.l.b16 %v295
  %v397 = vunpack.c.h.b16 %v295
  %v398 = vunpack.c.l.b16 %v296
  %v399 = vunpack.c.h.b16 %v296
  %v400 = vunpack.c.l.b16 %v297
  %v401 = vunpack.c.h.b16 %v297
  %v402 = vunpack.c.l.b16 %v298
  %v403 = vunpack.c.h.b16 %v298
  %v404 = vunpack.c.l.b16 %v299
  %v405 = vunpack.c.h.b16 %v299
  %v406 = vunpack.c.l.b16 %v300
  %v407 = vunpack.c.h.b16 %v300
  %v408 = vunpack.c.l.b16 %v301
  %v409 = vunpack.c.h.b16 %v301
  %v410 = vpack.c.b16 %v348, %v346
  %v411 = vpack.c.b16 %v349, %v347
  %v412 = vpack.c.b16 %v352, %v350
  %v413 = vpack.c.b16 %v353, %v351
  %v414 = vpack.c.b16 %v356, %v354
  %v415 = vpack.c.b16 %v357, %v355
  %v416 = vpack.c.b16 %v360, %v358
  %v417 = vpack.c.b16 %v361, %v359
  %v418 = vpack.c.b16 %v364, %v362
  %v419 = vpack.c.b16 %v365, %v363
  %v420 = vpack.c.b16 %v368, %v366
  %v421 = vpack.c.b16 %v369, %v367
  %v422 = vpack.c.b16 %v372, %v370
  %v423 = vpack.c.b16 %v373, %v371
  %v424 = vpack.c.b16 %v376, %v374
  %v425 = vpack.c.b16 %v377, %v375
  %v426 = vpack.c.b16 %v380, %v378
  %v427 = vpack.c.b16 %v381, %v379
  %v428 = vpack.c.b16 %v384, %v382
  %v429 = vpack.c.b16 %v385, %v383
  %v430 = vpack.c.b16 %v388, %v386
  %v431 = vpack.c.b16 %v389, %v387
  %v432 = vpack.c.b16 %v392, %v390
  %v433 = vpack.c.b16 %v393, %v391
  %v434 = vpack.c.b16 %v396, %v394
  %v435 = vpack.c.b16 %v397, %v395
  %v436 = vpack.c.b16 %v400, %v398
  %v437 = vpack.c.b16 %v401, %v399
  %v438 = vpack.c.b16 %v404, %v402
  %v439 = vpack.c.b16 %v405, %v403
  %v440 = vpack.c.b16 %v408, %v406
  %v441 = vpack.c.b16 %v409, %v407
  %474 = vmatprep.subr.bf16.mxu0 %v411
  %475 = vmatpush1.bf16.msra.mxu0 %v410
  %476 = vmatprep.subr.bf16.mxu0 %v413
  %477 = vmatpush1.bf16.msra.mxu0 %v412
  %478 = vmatprep.subr.bf16.mxu0 %v415
  %479 = vmatpush1.bf16.msra.mxu0 %v414
  %480 = vmatprep.subr.bf16.mxu0 %v417
  %481 = vmatpush1.bf16.msra.mxu0 %v416
  %482 = vmatprep.subr.bf16.mxu0 %v419
  %483 = vmatpush1.bf16.msra.mxu0 %v418
  %484 = vmatprep.subr.bf16.mxu0 %v421
  %485 = vmatpush1.bf16.msra.mxu0 %v420
  %486 = vmatprep.subr.bf16.mxu0 %v423
  %487 = vmatpush1.bf16.msra.mxu0 %v422
  %488 = vmatprep.subr.bf16.mxu0 %v425
  %489 = vmatpush1.bf16.msra.mxu0 %v424
  %490 = vmatprep.subr.bf16.mxu0 %v427
  %491 = vmatpush1.bf16.msra.mxu0 %v426
  %492 = vmatprep.subr.bf16.mxu0 %v429
  %493 = vmatpush1.bf16.msra.mxu0 %v428
  %494 = vmatprep.subr.bf16.mxu0 %v431
  %495 = vmatpush1.bf16.msra.mxu0 %v430
  %496 = vmatprep.subr.bf16.mxu0 %v433
  %497 = vmatpush1.bf16.msra.mxu0 %v432
  %498 = vmatprep.subr.bf16.mxu0 %v435
  %499 = vmatpush1.bf16.msra.mxu0 %v434
  %500 = vmatprep.subr.bf16.mxu0 %v437
  %501 = vmatpush1.bf16.msra.mxu0 %v436
  %502 = vmatprep.subr.bf16.mxu0 %v439
  %503 = vmatpush1.bf16.msra.mxu0 %v438
  %504 = vmatprep.subr.bf16.mxu0 %v441
  %505 = vmatpush1.bf16.msra.mxu0 %v440
  %506 = vmatprep.mubr.bf16.mxu0 %v269
  %507 = vmatmul.mubr.bf16.gmra.mrb[0].mxu0 %v268
  %v508 = vpop.f32.mrb[0].mxu0
  %v509 = vadd.f32 %v307, %v508
  %v510 = vpop.f32.mrb[0].mxu0
  %v511 = vadd.f32 %v311, %v510
  %v512 = vpop.f32.mrb[0].mxu0
  %v513 = vadd.f32 %v307, %v512
  %v514 = vpop.f32.mrb[0].mxu0
  %v515 = vadd.f32 %v311, %v514
  %516 = vdwg.mxu0
  %517 = vst [vmem:[%s8] sm:$0xff] %v509
  %518 = vst [vmem:[%s8 + $0x8] sm:$0xff] %v511
  %519 = vst [vmem:[%s8 + $0x10] sm:$0xff] %v513
  %520 = vst [vmem:[%s8 + $0x18] sm:$0xff] %v515
  // Predicated region
  $region34: #{mmdl_forward.1} parent=0 // pred_check
    _
  $region35: #{mmdl_forward.1} parent=0 // pred_check_branch
    %522 = sbr.rel (0) target = $region37
  $region36: #{mmdl_forward.1} parent=0 // pred_region
    _
  $region37: #{mmdl_forward.1} parent=0 // pred_fallthru
    _
  // Predicated region
  $region38: #{mmdl_forward.1} parent=0 // pred_check
    _
  $region39: #{mmdl_forward.1} parent=0 // pred_check_branch
    %524 = sbr.rel (0) target = $region41
  $region40: #{mmdl_forward.1} parent=0 // pred_region
    _
  $region41: #{mmdl_forward.1} parent=0 // pred_fallthru
    _

</llo_original>
